<compile_context>
chip_gen: v6e
topology: v6e:2x2x1
jax: 0.10.0
libtpu: 0.0.40
codegen_flags: <defaults>
</compile_context>

<pallas_src>
import functools
import math

import jax
import jax.numpy as jnp
from jax import lax
from jax.experimental import pallas as pl
from jax.experimental.pallas import tpu as pltpu

_LANE = 128
_SUBLANE = 8


def _round_up(x, m):
    return ((x + m - 1) // m) * m


def _pad2(a, rows, cols):
    return jnp.pad(a, ((0, rows - a.shape[0]), (0, cols - a.shape[1])))


# ---------------------------------------------------------------------------
# Kernels
# ---------------------------------------------------------------------------
def _mlp_kernel_resident(x_ref, w0_ref, b0_ref, wh_ref, bh_ref, wo_ref, bo_ref,
                         out_ref, *, num_hidden_layers, compute_dtype):
    """All weights resident in VMEM (replicated, single-buffered inputs)."""
    # Matmuls: compute_dtype (bf16) inputs, f32 accumulation on the MXU.
    # Bias-add / ReLU on the f32 accumulator (VPU), then downcast once so the
    # inter-layer carry travels as bf16.
    h = x_ref[...].astype(compute_dtype)

    y = jnp.dot(h, w0_ref[...], preferred_element_type=jnp.float32) + b0_ref[...]
    h = jnp.maximum(y, 0.0).astype(compute_dtype)

    def body(li, h_carry):
        # TODO(synk): verify in pl.lower_as_mlir that wh_ref[li] feeds the MXU directly
        # and does not materialize an extra (H_pad, H_pad) VMEM copy per layer.
        y = jnp.dot(h_carry, wh_ref[li],
                    preferred_element_type=jnp.float32) + bh_ref[li]
        return jnp.maximum(y, 0.0).astype(compute_dtype)

    if num_hidden_layers > 0:
        unroll = True if num_hidden_layers <= 8 else 4
        h = lax.fori_loop(0, num_hidden_layers, body, h, unroll=unroll)

    out = jnp.dot(h, wo_ref[...], preferred_element_type=jnp.float32) + bo_ref[...]
    out_ref[...] = out.astype(out_ref.dtype)


def _mlp_kernel_stream(x_ref, w0_ref, b0_ref, bh_ref, wo_ref, bo_ref, wh_hbm,
                       out_ref, wbuf, sem, *, num_hidden_layers, compute_dtype):
    """Hidden-layer weight stack stays in HBM and is streamed one (H,H) slice at
    a time through a double-buffered VMEM scratch (for configs whose resident
    weights would not fit VMEM, esp. v7x's 64 MiB/TC)."""
    L = num_hidden_layers

    def fetch(li, slot):
        pltpu.make_async_copy(wh_hbm.at[li], wbuf.at[slot], sem.at[slot]).start()

    if L > 0:
        fetch(0, 0)  # prime; overlaps with the input-layer matmul below

    h = x_ref[...].astype(compute_dtype)
    y = jnp.dot(h, w0_ref[...], preferred_element_type=jnp.float32) + b0_ref[...]
    h = jnp.maximum(y, 0.0).astype(compute_dtype)

    for li in range(L):  # L is a static Python int -> fully visible to the scheduler
        slot = li & 1
        pltpu.make_async_copy(wh_hbm.at[li], wbuf.at[slot], sem.at[slot]).wait()
        if li + 1 < L:
            fetch(li + 1, 1 - slot)
        y = jnp.dot(h, wbuf[slot], preferred_element_type=jnp.float32) + bh_ref[li]
        h = jnp.maximum(y, 0.0).astype(compute_dtype)

    out = jnp.dot(h, wo_ref[...], preferred_element_type=jnp.float32) + bo_ref[...]
    out_ref[...] = out.astype(out_ref.dtype)


# ---------------------------------------------------------------------------
# One-time parameter packing (hoisted out of the per-call path)
# ---------------------------------------------------------------------------
def prepare_deep_scale_net_params(params, *, use_bf16=True):
    """Pad feature dims to lane width (128), stack hidden layers, cast weights.

    params: list of (W, b) with W shape (in, out), b shape (1, out) (or (out,)).
            Layers: Linear(D,H)+ReLU, [Linear(H,H)+ReLU]*L, Linear(H,D).
    Returns a dict of packed device arrays + metadata; call once, reuse per call.
    """
    compute_dtype = jnp.bfloat16 if use_bf16 else jnp.float32
    L = len(params) - 2
    D = params[0][0].shape[0]
    H = params[0][0].shape[1]
    assert params[-1][0].shape[1] == D, "DeepScaleNet maps D -> D"

    D_pad = _round_up(D, _LANE)
    H_pad = _round_up(H, _LANE)

    w0, b0 = params[0]
    wo, bo = params[-1]
    packed = dict(
        D=D, H=H, L=L, D_pad=D_pad, H_pad=H_pad, compute_dtype=compute_dtype,
        w0=_pad2(w0, D_pad, H_pad).astype(compute_dtype),
        b0=_pad2(jnp.reshape(b0, (1, -1)), 1, H_pad).astype(jnp.float32),
        wo=_pad2(wo, H_pad, D_pad).astype(compute_dtype),
        bo=_pad2(jnp.reshape(bo, (1, -1)), 1, D_pad).astype(jnp.float32),
    )
    if L > 0:
        packed["wh"] = jnp.stack(
            [_pad2(w, H_pad, H_pad) for (w, _) in params[1:-1]]).astype(compute_dtype)
        packed["bh"] = jnp.stack(
            [_pad2(jnp.reshape(b, (1, -1)), 1, H_pad) for (_, b) in params[1:-1]]
        ).astype(jnp.float32)
    else:  # dummies, never read (hidden loop has zero layers)
        packed["wh"] = jnp.zeros((1, H_pad, H_pad), compute_dtype)
        packed["bh"] = jnp.zeros((1, 1, H_pad), jnp.float32)
    return packed


# ---------------------------------------------------------------------------
# Wrapper
# ---------------------------------------------------------------------------
def deep_scale_net_pallas(x, packed, *, block_batch=512, stream_weights=None):
    """DeepScaleNet forward as one fused Pallas kernel.

    x:      (B, D) float32
    packed: output of prepare_deep_scale_net_params().
    """
    B, D = x.shape
    assert D == packed["D"]
    L = packed["L"]
    D_pad, H_pad = packed["D_pad"], packed["H_pad"]
    compute_dtype = packed["compute_dtype"]

    # ---- tail-aware batch tiling; >=2 steps so both v7x TCs get work ------
    steps = pl.cdiv(B, block_batch)
    if steps == 1 and B >= 2 * _SUBLANE:
        steps = 2
    bm = _round_up(pl.cdiv(B, steps), _SUBLANE)
    B_pad = steps * bm
    grid = (steps,)

    x_p = _pad2(x, B_pad, D_pad)

    w0_p, b0_p = packed["w0"], packed["b0"]
    wh_p, bh_p = packed["wh"], packed["bh"]
    wo_p, bo_p = packed["wo"], packed["bo"]

    resident_param_bytes = sum(int(a.size) * a.dtype.itemsize
                               for a in (w0_p, b0_p, wh_p, bh_p, wo_p, bo_p))

    try:
        phys_vmem = int(pltpu.get_tpu_info().vmem_capacity_bytes)
    except Exception:
        phys_vmem = 64 << 20  # conservative (v7x per-TC VMEM)

    if stream_weights is None:
        # Keep weights resident only while they comfortably fit (key on v7x 64 MiB/TC).
        stream_weights = resident_param_bytes > min(40 << 20, phys_vmem * 5 // 8)
    stream_weights = bool(stream_weights) and L > 0

    def _rep(arr):
        # Replicated (constant-index) parameter: no pipelining needed -> single buffer.
        nd = arr.ndim
        return pl.BlockSpec(arr.shape, lambda i, _nd=nd: (0,) * _nd,
                            pipeline_mode=pl.Buffered(1))

    x_spec = pl.BlockSpec((bm, D_pad), lambda i: (i, 0))
    out_specs = pl.BlockSpec((bm, D_pad), lambda i: (i, 0))

    io_bytes = 2 * 2 * bm * D_pad * x.dtype.itemsize   # double-buffered x + out tiles
    act_bytes = 4 * bm * H_pad * 4                      # activation temporaries headroom
    flops = 2 * B_pad * (D_pad * H_pad + L * H_pad * H_pad + H_pad * D_pad)

    if not stream_weights:
        kernel = functools.partial(_mlp_kernel_resident,
                                   num_hidden_layers=L, compute_dtype=compute_dtype)
        in_specs = [x_spec, _rep(w0_p), _rep(b0_p), _rep(wh_p), _rep(bh_p),
                    _rep(wo_p), _rep(bo_p)]
        operands = (x_p, w0_p, b0_p, wh_p, bh_p, wo_p, bo_p)
        scratch_shapes = []
        vmem_needed = resident_param_bytes + io_bytes + act_bytes
        bytes_accessed = (int(x_p.size) * x_p.dtype.itemsize
                          + B_pad * D_pad * x.dtype.itemsize
                          + resident_param_bytes)
    else:
        kernel = functools.partial(_mlp_kernel_stream,
                                   num_hidden_layers=L, compute_dtype=compute_dtype)
        in_specs = [x_spec, _rep(w0_p), _rep(b0_p), _rep(bh_p), _rep(wo_p),
                    _rep(bo_p), pl.BlockSpec(memory_space=pl.ANY)]
        operands = (x_p, w0_p, b0_p, bh_p, wo_p, bo_p, wh_p)
        wdt_bytes = jnp.dtype(compute_dtype).itemsize
        scratch_shapes = [pltpu.VMEM((2, H_pad, H_pad), compute_dtype),
                          pltpu.SemaphoreType.DMA((2,))]
        wh_bytes = int(wh_p.size) * wh_p.dtype.itemsize
        small_param_bytes = resident_param_bytes - wh_bytes
        vmem_needed = (small_param_bytes + 2 * H_pad * H_pad * wdt_bytes
                       + io_bytes + act_bytes)
        bytes_accessed = (int(x_p.size) * x_p.dtype.itemsize
                          + B_pad * D_pad * x.dtype.itemsize
                          + small_param_bytes
                          + steps * wh_bytes)        # hidden stack re-streamed per step

    # Params are single-buffered (counted 1x); only the x/out tiles are double-buffered.
    vmem_limit = int(min(max(int(vmem_needed * 1.25) + (2 << 20), 32 << 20),
                         phys_vmem * 7 // 8))

    cost = pl.CostEstimate(flops=int(flops), transcendentals=0,
                           bytes_accessed=int(bytes_accessed))

    out_p = pl.pallas_call(
        kernel,
        out_shape=jax.ShapeDtypeStruct((B_pad, D_pad), x.dtype),
        grid_spec=pltpu.PrefetchScalarGridSpec(
            num_scalar_prefetch=0,
            grid=grid,
            in_specs=in_specs,
            out_specs=out_specs,
            scratch_shapes=scratch_shapes,
        ),
        compiler_params=pltpu.CompilerParams(
            dimension_semantics=("parallel",),
            vmem_limit_bytes=vmem_limit,
        ),
        cost_estimate=cost,
    )(*operands)

    return out_p[:B, :D]


# ---------------------------------------------------------------------------
# Init + reference
# ---------------------------------------------------------------------------
def init_deep_scale_net_params(key, D, num_hidden, num_layers):
    """Init matching PyTorch nn.Linear default (U[-1/sqrt(in), 1/sqrt(in)]).

    Returns list of (W, b) with W shape (in, out), b shape (1, out).
    """
    dims = [(D, num_hidden)] + [(num_hidden, num_hidden)] * num_layers + [(num_hidden, D)]
    params = []
    for (fan_in, fan_out) in dims:
        key, kw, kb = jax.random.split(key, 3)
        bound = 1.0 / math.sqrt(fan_in)
        W = jax.random.uniform(kw, (fan_in, fan_out), jnp.float32, -bound, bound)
        b = jax.random.uniform(kb, (1, fan_out), jnp.float32, -bound, bound)
        params.append((W, b))
    return params


def deep_scale_net_ref(x, params):
    h = x
    for (W, b) in params[:-1]:
        h = jnp.maximum(h @ W + b, 0.0)
    W, b = params[-1]
    return h @ W + b


if __name__ == "__main__":
    # Small shapes consistent with forward(x: (batch, D)).
    B, D, H, L = 8, 4, 32, 2

    key = jax.random.PRNGKey(0)
    key, kx = jax.random.split(key)
    x = jax.random.normal(kx, (B, D), jnp.float32)

    params = init_deep_scale_net_params(key, D, H, L)
    packed = prepare_deep_scale_net_params(params, use_bf16=True)  # one-time packing

    ref = deep_scale_net_ref(x, params)

    # Resident-weights path (default for small configs).
    out_res = jax.block_until_ready(deep_scale_net_pallas(x, packed))
    # HBM weight-streaming path (auto-selected for large configs / v7x); forced here so it
    # is also exercised and checked at small shapes.
    out_str = jax.block_until_ready(
        deep_scale_net_pallas(x, packed, stream_weights=True))

    assert out_res.shape == (B, D) and out_str.shape == (B, D)

    # bf16 MXU inputs + bf16 inter-layer carry with f32 accumulation -> loosened tolerance
    # vs the pure-f32 reference.
    err_res = float(jnp.max(jnp.abs(out_res - ref)))
    err_str = float(jnp.max(jnp.abs(out_str - ref)))
    assert jnp.allclose(out_res, ref, atol=1e-1, rtol=1e-1), (
        f"resident path mismatch vs reference (max abs err {err_res})")
    assert jnp.allclose(out_str, ref, atol=1e-1, rtol=1e-1), (
        f"streaming path mismatch vs reference (max abs err {err_str})")
    assert jnp.allclose(out_res, out_str, atol=1e-2, rtol=1e-2), (
        "resident vs streaming path disagree")

    print("KERNEL_OK")
</pallas_src>

<mosaic_0001>
module attributes {stable_mosaic.version = 11 : i64} {
  func.func @_mlp_kernel_resident(%arg0: i32, %arg1: memref<8x128xf32, #tpu.memory_space<vmem>>, %arg2: memref<128x128xbf16, #tpu.memory_space<vmem>>, %arg3: memref<1x128xf32, #tpu.memory_space<vmem>>, %arg4: memref<2x128x128xbf16, #tpu.memory_space<vmem>>, %arg5: memref<2x1x128xf32, #tpu.memory_space<vmem>>, %arg6: memref<128x128xbf16, #tpu.memory_space<vmem>>, %arg7: memref<1x128xf32, #tpu.memory_space<vmem>>, %arg8: memref<8x128xf32, #tpu.memory_space<vmem>>) attributes {dimension_semantics = [#tpu.dimension_semantics<parallel>], iteration_bounds = array<i64: 1>, scalar_prefetch = 0 : i64, scratch_operands = 0 : i64, tpu.core_type = #tpu.core_type<tc>, window_params = [{transform_indices = @transform_0, window_bounds = array<i64: 8, 128>}, {pipeline_mode = #tpu.pipeline_mode<synchronous>, transform_indices = @transform_1, window_bounds = array<i64: 128, 128>}, {pipeline_mode = #tpu.pipeline_mode<synchronous>, transform_indices = @transform_2, window_bounds = array<i64: 1, 128>}, {pipeline_mode = #tpu.pipeline_mode<synchronous>, transform_indices = @transform_3, window_bounds = array<i64: 2, 128, 128>}, {pipeline_mode = #tpu.pipeline_mode<synchronous>, transform_indices = @transform_4, window_bounds = array<i64: 2, 1, 128>}, {pipeline_mode = #tpu.pipeline_mode<synchronous>, transform_indices = @transform_5, window_bounds = array<i64: 128, 128>}, {pipeline_mode = #tpu.pipeline_mode<synchronous>, transform_indices = @transform_6, window_bounds = array<i64: 1, 128>}, {transform_indices = @transform_7, window_bounds = array<i64: 8, 128>}]} {
    %c0 = arith.constant 0 : index
    %c0_0 = arith.constant 0 : index
    %0 = vector.load %arg1[%c0, %c0_0] : memref<8x128xf32, #tpu.memory_space<vmem>>, vector<8x128xf32>
    %1 = arith.truncf %0 : vector<8x128xf32> to vector<8x128xbf16>
    %c0_1 = arith.constant 0 : index
    %c0_2 = arith.constant 0 : index
    %2 = vector.load %arg2[%c0_1, %c0_2] : memref<128x128xbf16, #tpu.memory_space<vmem>>, vector<128x128xbf16>
    %cst = arith.constant dense<0.000000e+00> : vector<8x128xf32>
    %3 = tpu.matmul %1, %2, %cst {dimension_numbers = #tpu.dot_dimension_numbers<[1], [0], [0], [1], [0, 0, 1, 1], [], []>} : vector<8x128xbf16>, vector<128x128xbf16>, vector<8x128xf32> -> vector<8x128xf32>
    %c0_3 = arith.constant 0 : index
    %c0_4 = arith.constant 0 : index
    %4 = vector.load %arg3[%c0_3, %c0_4] : memref<1x128xf32, #tpu.memory_space<vmem>>, vector<1x128xf32>
    %5 = vector.broadcast %4 : vector<1x128xf32> to vector<8x128xf32>
    %6 = arith.addf %3, %5 : vector<8x128xf32>
    %cst_5 = arith.constant 0.000000e+00 : f32
    %7 = vector.broadcast %cst_5 : f32 to vector<8x128xf32>
    %8 = arith.maximumf %6, %7 : vector<8x128xf32>
    %9 = arith.truncf %8 : vector<8x128xf32> to vector<8x128xbf16>
    %c0_i32 = arith.constant 0 : i32
    %10 = arith.index_cast %c0_i32 : i32 to index
    %c0_6 = arith.constant 0 : index
    %c0_7 = arith.constant 0 : index
    %11 = vector.load %arg4[%10, %c0_6, %c0_7] : memref<2x128x128xbf16, #tpu.memory_space<vmem>>, vector<1x128x128xbf16>
    %12 = vector.shape_cast %11 : vector<1x128x128xbf16> to vector<128x128xbf16>
    %cst_8 = arith.constant dense<0.000000e+00> : vector<8x128xf32>
    %13 = tpu.matmul %9, %12, %cst_8 {dimension_numbers = #tpu.dot_dimension_numbers<[1], [0], [0], [1], [0, 0, 1, 1], [], []>} : vector<8x128xbf16>, vector<128x128xbf16>, vector<8x128xf32> -> vector<8x128xf32>
    %14 = arith.index_cast %c0_i32 : i32 to index
    %c0_9 = arith.constant 0 : index
    %c0_10 = arith.constant 0 : index
    %15 = vector.load %arg5[%14, %c0_9, %c0_10] : memref<2x1x128xf32, #tpu.memory_space<vmem>>, vector<1x1x128xf32>
    %16 = vector.shape_cast %15 : vector<1x1x128xf32> to vector<1x128xf32>
    %17 = vector.broadcast %16 : vector<1x128xf32> to vector<8x128xf32>
    %18 = arith.addf %13, %17 : vector<8x128xf32>
    %cst_11 = arith.constant 0.000000e+00 : f32
    %19 = vector.broadcast %cst_11 : f32 to vector<8x128xf32>
    %20 = arith.maximumf %18, %19 : vector<8x128xf32>
    %21 = arith.truncf %20 : vector<8x128xf32> to vector<8x128xbf16>
    %c1_i32 = arith.constant 1 : i32
    %22 = arith.index_cast %c1_i32 : i32 to index
    %c0_12 = arith.constant 0 : index
    %c0_13 = arith.constant 0 : index
    %23 = vector.load %arg4[%22, %c0_12, %c0_13] : memref<2x128x128xbf16, #tpu.memory_space<vmem>>, vector<1x128x128xbf16>
    %24 = vector.shape_cast %23 : vector<1x128x128xbf16> to vector<128x128xbf16>
    %cst_14 = arith.constant dense<0.000000e+00> : vector<8x128xf32>
    %25 = tpu.matmul %21, %24, %cst_14 {dimension_numbers = #tpu.dot_dimension_numbers<[1], [0], [0], [1], [0, 0, 1, 1], [], []>} : vector<8x128xbf16>, vector<128x128xbf16>, vector<8x128xf32> -> vector<8x128xf32>
    %26 = arith.index_cast %c1_i32 : i32 to index
    %c0_15 = arith.constant 0 : index
    %c0_16 = arith.constant 0 : index
    %27 = vector.load %arg5[%26, %c0_15, %c0_16] : memref<2x1x128xf32, #tpu.memory_space<vmem>>, vector<1x1x128xf32>
    %28 = vector.shape_cast %27 : vector<1x1x128xf32> to vector<1x128xf32>
    %29 = vector.broadcast %28 : vector<1x128xf32> to vector<8x128xf32>
    %30 = arith.addf %25, %29 : vector<8x128xf32>
    %cst_17 = arith.constant 0.000000e+00 : f32
    %31 = vector.broadcast %cst_17 : f32 to vector<8x128xf32>
    %32 = arith.maximumf %30, %31 : vector<8x128xf32>
    %33 = arith.truncf %32 : vector<8x128xf32> to vector<8x128xbf16>
    %c2_i32 = arith.constant 2 : i32
    %c0_18 = arith.constant 0 : index
    %c0_19 = arith.constant 0 : index
    %34 = vector.load %arg6[%c0_18, %c0_19] : memref<128x128xbf16, #tpu.memory_space<vmem>>, vector<128x128xbf16>
    %cst_20 = arith.constant dense<0.000000e+00> : vector<8x128xf32>
    %35 = tpu.matmul %33, %34, %cst_20 {dimension_numbers = #tpu.dot_dimension_numbers<[1], [0], [0], [1], [0, 0, 1, 1], [], []>} : vector<8x128xbf16>, vector<128x128xbf16>, vector<8x128xf32> -> vector<8x128xf32>
    %c0_21 = arith.constant 0 : index
    %c0_22 = arith.constant 0 : index
    %36 = vector.load %arg7[%c0_21, %c0_22] : memref<1x128xf32, #tpu.memory_space<vmem>>, vector<1x128xf32>
    %37 = vector.broadcast %36 : vector<1x128xf32> to vector<8x128xf32>
    %38 = arith.addf %35, %37 : vector<8x128xf32>
    %c0_23 = arith.constant 0 : index
    %c0_24 = arith.constant 0 : index
    %39 = vector.load %arg8[%c0_23, %c0_24] : memref<8x128xf32, #tpu.memory_space<vmem>>, vector<8x128xf32>
    tpu.vector_store %arg8[%c0_23, %c0_24], %38 {strides = array<i32>} : memref<8x128xf32, #tpu.memory_space<vmem>>, vector<8x128xf32>,
    return
  }
  func.func @transform_0(%arg0: i32) -> (i32, i32) {
    %c0_i32 = arith.constant 0 : i32
    %c0_i32_0 = arith.constant 0 : i32
    return %arg0, %c0_i32 : i32, i32
  }
  func.func @transform_1(%arg0: i32) -> (i32, i32) {
    %c0_i32 = arith.constant 0 : i32
    %c0_i32_0 = arith.constant 0 : i32
    %c0_i32_1 = arith.constant 0 : i32
    return %c0_i32, %c0_i32_0 : i32, i32
  }
  func.func @transform_2(%arg0: i32) -> (i32, i32) {
    %c0_i32 = arith.constant 0 : i32
    %c0_i32_0 = arith.constant 0 : i32
    %c0_i32_1 = arith.constant 0 : i32
    return %c0_i32, %c0_i32_0 : i32, i32
  }
  func.func @transform_3(%arg0: i32) -> (i32, i32, i32) {
    %c0_i32 = arith.constant 0 : i32
    %c0_i32_0 = arith.constant 0 : i32
    %c0_i32_1 = arith.constant 0 : i32
    %c0_i32_2 = arith.constant 0 : i32
    return %c0_i32, %c0_i32_0, %c0_i32_1 : i32, i32, i32
  }
  func.func @transform_4(%arg0: i32) -> (i32, i32, i32) {
    %c0_i32 = arith.constant 0 : i32
    %c0_i32_0 = arith.constant 0 : i32
    %c0_i32_1 = arith.constant 0 : i32
    %c0_i32_2 = arith.constant 0 : i32
    return %c0_i32, %c0_i32_0, %c0_i32_1 : i32, i32, i32
  }
  func.func @transform_5(%arg0: i32) -> (i32, i32) {
    %c0_i32 = arith.constant 0 : i32
    %c0_i32_0 = arith.constant 0 : i32
    %c0_i32_1 = arith.constant 0 : i32
    return %c0_i32, %c0_i32_0 : i32, i32
  }
  func.func @transform_6(%arg0: i32) -> (i32, i32) {
    %c0_i32 = arith.constant 0 : i32
    %c0_i32_0 = arith.constant 0 : i32
    %c0_i32_1 = arith.constant 0 : i32
    return %c0_i32, %c0_i32_0 : i32, i32
  }
  func.func @transform_7(%arg0: i32) -> (i32, i32) {
    %c0_i32 = arith.constant 0 : i32
    %c0_i32_0 = arith.constant 0 : i32
    return %arg0, %c0_i32 : i32, i32
  }
}

</mosaic_0001>

<llo_original>
// kernel: tpu_custom_call.1
$region0: #{tpu_custom_call.1}
  #allocation0 [shape = 'u32[]', space=smem, size = 0x4, offset = 0x4, fixed_abs, tag = 'smem constant byte address 0x4 - core index']
  #allocation1 [shape = 'u32[144,128]{1,0:T(1,128)}', space=vmem, size = 0x12000, scoped, tag = 'internal scratch']
  %s0 = inlined_call_operand.hbm [shape: f32[8,128], index: 0, kind: input, shape index: {}]
  %s1 = inlined_call_operand.hbm [shape: bf16[128,128], index: 1, kind: input, shape index: {}]
  %s2 = inlined_call_operand.vmem [shape: f32[1,128], index: 2, kind: input, shape index: {}]
  %s3 = inlined_call_operand.hbm [shape: bf16[2,128,128], index: 3, kind: input, shape index: {}]
  %s4 = inlined_call_operand.vmem [shape: f32[2,1,128], index: 4, kind: input, shape index: {}]
  %s5 = inlined_call_operand.hbm [shape: bf16[128,128], index: 5, kind: input, shape index: {}]
  %s6 = inlined_call_operand.vmem [shape: f32[1,128], index: 6, kind: input, shape index: {}]
  %s7 = inlined_call_operand.hbm [shape: f32[8,128], index: 7, kind: output, shape index: {}]
  %s8 = sld [smem:[#allocation0]]
  $region54: #{tpu_custom_call.1} parent=0
    _
  %s10 = ssub.s32 1, %s8
  %s11 = scalar_select 0, %s10, %s8
  $region1: #{tpu_custom_call.1} parent=0
    #allocation2 [shape = 'u8[4096]{0}', space=vmem, size = 0x1000, scoped, tag = 'input window, operand 0, single buffered']
    #allocation3 [shape = 's32[1]{0}', space=sflag, size = 0x4, scoped, tag = 'scoped memory for tpu_custom_call.1']
    #allocation4 [shape = 's32[1]{0}', space=sflag, size = 0x4, scoped, tag = 'scoped memory for tpu_custom_call.1']
    #allocation5 [shape = 'u8[32768]{0}', space=vmem, size = 0x8000, scoped, tag = 'input window, operand 1, single buffered']
    #allocation6 [shape = 's32[1]{0}', space=sflag, size = 0x4, scoped, tag = 'scoped memory for tpu_custom_call.1']
    #allocation7 [shape = 'u8[65536]{0}', space=vmem, size = 0x10000, scoped, tag = 'input window, operand 3, single buffered']
    #allocation8 [shape = 'u8[32768]{0}', space=vmem, size = 0x8000, scoped, tag = 'input window, operand 5, single buffered']
    #allocation9 [shape = 's32[1]{0}', space=sflag, size = 0x4, scoped, tag = 'scoped memory for tpu_custom_call.1']
    #allocation10 [shape = 'u8[4096]{0}', space=vmem, size = 0x1000, scoped, tag = 'output window, operand 0, single buffered']
    %12 = vsyncpa [#allocation3], 0
    %13 = vsyncpa [#allocation6], 0
    %14 = vsyncpa [#allocation9], 0
    %15 = vsyncpa [#allocation4], 0
    // Predicated region
    $region2: #{tpu_custom_call.1} parent=1 // pred_check
      _
    $region3: #{tpu_custom_call.1} parent=1 // pred_check_branch
      %17 = sbr.rel (0) target = $region5
    $region4: #{tpu_custom_call.1} parent=1 // pred_region
      %s19 = ssub.s32 128, 128
      %20 = vsyncadd [#allocation3], %s19
      %s22 = sshll.u32 [#allocation2], 4
      %s23 = int_to_ptr.vmem [resolvable:$true] %s22
      %25 = dma.hbm_to_vmem [thread:$0]  %s0, 128, %s23, [#allocation3]
    $region5: #{tpu_custom_call.1} parent=1 // pred_fallthru
      _
    // Predicated region
    $region6: #{tpu_custom_call.1} parent=1 // pred_check
      _
    $region7: #{tpu_custom_call.1} parent=1 // pred_check_branch
      %27 = sbr.rel (0) target = $region9
    $region8: #{tpu_custom_call.1} parent=1 // pred_region
      %s29 = ssub.s32 1024, 1024
      %30 = vsyncadd [#allocation6], %s29
      %s31 = sshll.u32 [#allocation5], 4
      %s32 = int_to_ptr.vmem [resolvable:$true] %s31
      %37 = dma.hbm_to_vmem [thread:$0]  %s1, 1024, %s32, [#allocation6], 64, 64, 4
    $region9: #{tpu_custom_call.1} parent=1 // pred_fallthru
      _
    // Predicated region
    $region10: #{tpu_custom_call.1} parent=1 // pred_check
      _
    $region11: #{tpu_custom_call.1} parent=1 // pred_check_branch
      %39 = sbr.rel (0) target = $region13
    $region12: #{tpu_custom_call.1} parent=1 // pred_region
      _
    $region13: #{tpu_custom_call.1} parent=1 // pred_fallthru
      _
    // Predicated region
    $region14: #{tpu_custom_call.1} parent=1 // pred_check
      _
    $region15: #{tpu_custom_call.1} parent=1 // pred_check_branch
      %41 = sbr.rel (0) target = $region17
    $region16: #{tpu_custom_call.1} parent=1 // pred_region
      %s43 = ssub.s32 2048, 2048
      %44 = vsyncadd [#allocation6], %s43
      %s45 = sshll.u32 [#allocation7], 4
      %s46 = int_to_ptr.vmem [resolvable:$true] %s45
      %51 = dma.hbm_to_vmem [thread:$0]  %s3, 2048, %s46, [#allocation6], 64, 64, 4
    $region17: #{tpu_custom_call.1} parent=1 // pred_fallthru
      _
    // Predicated region
    $region18: #{tpu_custom_call.1} parent=1 // pred_check
      _
    $region19: #{tpu_custom_call.1} parent=1 // pred_check_branch
      %53 = sbr.rel (0) target = $region21
    $region20: #{tpu_custom_call.1} parent=1 // pred_region
      _
    $region21: #{tpu_custom_call.1} parent=1 // pred_fallthru
      _
    // Predicated region
    $region22: #{tpu_custom_call.1} parent=1 // pred_check
      _
    $region23: #{tpu_custom_call.1} parent=1 // pred_check_branch
      %55 = sbr.rel (0) target = $region25
    $region24: #{tpu_custom_call.1} parent=1 // pred_region
      %s57 = ssub.s32 1024, 1024
      %58 = vsyncadd [#allocation9], %s57
      %s59 = sshll.u32 [#allocation8], 4
      %s60 = int_to_ptr.vmem [resolvable:$true] %s59
      %65 = dma.hbm_to_vmem [thread:$0]  %s5, 1024, %s60, [#allocation9], 64, 64, 4
    $region25: #{tpu_custom_call.1} parent=1 // pred_fallthru
      _
    // Predicated region
    $region26: #{tpu_custom_call.1} parent=1 // pred_check
      _
    $region27: #{tpu_custom_call.1} parent=1 // pred_check_branch
      %67 = sbr.rel (0) target = $region29
    $region28: #{tpu_custom_call.1} parent=1 // pred_region
      _
    $region29: #{tpu_custom_call.1} parent=1 // pred_fallthru
      _
    // Predicated region
    $region30: #{tpu_custom_call.1} parent=1 // pred_check
      _
    $region31: #{tpu_custom_call.1} parent=1 // pred_check_branch
      %69 = sbr.rel (0) target = $region33
    $region32: #{tpu_custom_call.1} parent=1 // pred_region
      %70 = dma.done [#allocation3], 128
    $region33: #{tpu_custom_call.1} parent=1 // pred_fallthru
      _
    // Predicated region
    $region34: #{tpu_custom_call.1} parent=1 // pred_check
      _
    $region35: #{tpu_custom_call.1} parent=1 // pred_check_branch
      %72 = sbr.rel (0) target = $region37
    $region36: #{tpu_custom_call.1} parent=1 // pred_region
      %73 = dma.done [#allocation6], 1024
    $region37: #{tpu_custom_call.1} parent=1 // pred_fallthru
      _
    // Predicated region
    $region38: #{tpu_custom_call.1} parent=1 // pred_check
      _
    $region39: #{tpu_custom_call.1} parent=1 // pred_check_branch
      %75 = sbr.rel (0) target = $region41
    $region40: #{tpu_custom_call.1} parent=1 // pred_region
      %76 = dma.done [#allocation6], 2048
    $region41: #{tpu_custom_call.1} parent=1 // pred_fallthru
      _
    // Predicated region
    $region42: #{tpu_custom_call.1} parent=1 // pred_check
      _
    $region43: #{tpu_custom_call.1} parent=1 // pred_check_branch
      %78 = sbr.rel (0) target = $region45
    $region44: #{tpu_custom_call.1} parent=1 // pred_region
      %79 = dma.done [#allocation9], 1024
    $region45: #{tpu_custom_call.1} parent=1 // pred_fallthru
      _
    %v81 = vld [vmem:[#allocation2] sm:$0xff]
    %v82 = vpack.c.bf16 %v81, %v81
    %v83 = vld [vmem:[#allocation5] sm:$0xf]
    %v84 = vld [vmem:[#allocation5 + $0x4] sm:$0xf]
    %v85 = vld [vmem:[#allocation5 + $0x8] sm:$0xf]
    %v86 = vld [vmem:[#allocation5 + $0xc] sm:$0xf]
    %v87 = vld [vmem:[#allocation5 + $0x10] sm:$0xf]
    %v88 = vld [vmem:[#allocation5 + $0x14] sm:$0xf]
    %v89 = vld [vmem:[#allocation5 + $0x18] sm:$0xf]
    %v90 = vld [vmem:[#allocation5 + $0x1c] sm:$0xf]
    %v91 = vld [vmem:[#allocation5 + $0x20] sm:$0xf]
    %v92 = vld [vmem:[#allocation5 + $0x24] sm:$0xf]
    %v93 = vld [vmem:[#allocation5 + $0x28] sm:$0xf]
    %v94 = vld [vmem:[#allocation5 + $0x2c] sm:$0xf]
    %v95 = vld [vmem:[#allocation5 + $0x30] sm:$0xf]
    %v96 = vld [vmem:[#allocation5 + $0x34] sm:$0xf]
    %v97 = vld [vmem:[#allocation5 + $0x38] sm:$0xf]
    %v98 = vld [vmem:[#allocation5 + $0x3c] sm:$0xf]
    %v99 = vld [vmem:[%s2] sm:$0x1]
    %v101 = vlaneseq
    %v102 = vshrl.u32 %v101, 7
    %v103 = vsub.s32 0, %v102
    %v104 = vrot.slane %v99, %v103
    %v122 = vunpack.c.l.b16 %v83
    %v123 = vunpack.c.l.b16 %v84
    %v124 = vunpack.c.l.b16 %v85
    %v125 = vunpack.c.l.b16 %v86
    %v126 = vunpack.c.l.b16 %v87
    %v127 = vunpack.c.l.b16 %v88
    %v128 = vunpack.c.l.b16 %v89
    %v129 = vunpack.c.l.b16 %v90
    %v130 = vunpack.c.l.b16 %v91
    %v131 = vunpack.c.l.b16 %v92
    %v132 = vunpack.c.l.b16 %v93
    %v133 = vunpack.c.l.b16 %v94
    %v134 = vunpack.c.l.b16 %v95
    %v135 = vunpack.c.l.b16 %v96
    %v136 = vunpack.c.l.b16 %v97
    %v137 = vunpack.c.l.b16 %v98
    %v138 = vpack.c.b16 %v123, %v122
    %v139 = vpack.c.b16 %v125, %v124
    %v140 = vpack.c.b16 %v127, %v126
    %v141 = vpack.c.b16 %v129, %v128
    %v142 = vpack.c.b16 %v131, %v130
    %v143 = vpack.c.b16 %v133, %v132
    %v144 = vpack.c.b16 %v135, %v134
    %v145 = vpack.c.b16 %v137, %v136
    %154 = vmatprep.subr.bf16.mxu0 0
    %155 = vmatpush1.bf16.msra.mxu0 %v145
    %156 = vmatprep.subr.bf16.mxu0 0
    %157 = vmatpush1.bf16.msra.mxu0 %v144
    %158 = vmatprep.subr.bf16.mxu0 0
    %159 = vmatpush1.bf16.msra.mxu0 %v143
    %160 = vmatprep.subr.bf16.mxu0 0
    %161 = vmatpush1.bf16.msra.mxu0 %v142
    %162 = vmatprep.subr.bf16.mxu0 0
    %163 = vmatpush1.bf16.msra.mxu0 %v141
    %164 = vmatprep.subr.bf16.mxu0 0
    %165 = vmatpush1.bf16.msra.mxu0 %v140
    %166 = vmatprep.subr.bf16.mxu0 0
    %167 = vmatpush1.bf16.msra.mxu0 %v139
    %168 = vmatprep.subr.bf16.mxu0 0
    %169 = vmatpush1.bf16.msra.mxu0 %v138
    %170 = vmatprep.subr.bf16.mxu0 0
    %171 = vmatpush2.bf16.msra.mxu0 0
    %172 = vmatprep.subr.bf16.mxu0 0
    %173 = vmatpush2.bf16.msra.mxu0 0
    %174 = vmatprep.subr.bf16.mxu0 0
    %175 = vmatpush2.bf16.msra.mxu0 0
    %176 = vmatprep.subr.bf16.mxu0 0
    %177 = vmatpush2.bf16.msra.mxu0 0
    %178 = vmatprep.subr.bf16.mxu0 0
    %179 = vmatpush2.bf16.msra.mxu0 0
    %180 = vmatprep.subr.bf16.mxu0 0
    %181 = vmatpush2.bf16.msra.mxu0 0
    %182 = vmatprep.subr.bf16.mxu0 0
    %183 = vmatpush2.bf16.msra.mxu0 0
    %184 = vmatprep.subr.bf16.mxu0 0
    %185 = vmatpush2.bf16.msra.mxu0 0
    %186 = vmatprep.mubr.bf16.mxu0 0
    %187 = vmatmul.mubr.bf16.gmra.mxu0 %v82
    %v188 = vpop.f32.mrf.mxu0
    %v189 = vadd.f32 %v104, %v188
    %v190 = vpop.f32.mrf.mxu0
    %v191 = vpop.f32.mrf.mxu0
    %v192 = vpop.f32.mrf.mxu0
    %193 = vdwg.mxu0
    %v194 = vmax.f32 %v189, 0.0
    %v195 = vpack.c.bf16 %v194, %v194
    %v196 = vld [vmem:[#allocation7] sm:$0xf]
    %v197 = vld [vmem:[#allocation7 + $0x4] sm:$0xf]
    %v198 = vld [vmem:[#allocation7 + $0x8] sm:$0xf]
    %v199 = vld [vmem:[#allocation7 + $0xc] sm:$0xf]
    %v200 = vld [vmem:[#allocation7 + $0x10] sm:$0xf]
    %v201 = vld [vmem:[#allocation7 + $0x14] sm:$0xf]
    %v202 = vld [vmem:[#allocation7 + $0x18] sm:$0xf]
    %v203 = vld [vmem:[#allocation7 + $0x1c] sm:$0xf]
    %v204 = vld [vmem:[#allocation7 + $0x20] sm:$0xf]
    %v205 = vld [vmem:[#allocation7 + $0x24] sm:$0xf]
    %v206 = vld [vmem:[#allocation7 + $0x28] sm:$0xf]
    %v207 = vld [vmem:[#allocation7 + $0x2c] sm:$0xf]
    %v208 = vld [vmem:[#allocation7 + $0x30] sm:$0xf]
    %v209 = vld [vmem:[#allocation7 + $0x34] sm:$0xf]
    %v210 = vld [vmem:[#allocation7 + $0x38] sm:$0xf]
    %v211 = vld [vmem:[#allocation7 + $0x3c] sm:$0xf]
    %v212 = vld [vmem:[%s4] sm:$0x1]
    %v214 = vlaneseq
    %v215 = vshrl.u32 %v214, 7
    %v216 = vsub.s32 0, %v215
    %v217 = vrot.slane %v212, %v216
    %v235 = vunpack.c.l.b16 %v196
    %v236 = vunpack.c.l.b16 %v197
    %v237 = vunpack.c.l.b16 %v198
    %v238 = vunpack.c.l.b16 %v199
    %v239 = vunpack.c.l.b16 %v200
    %v240 = vunpack.c.l.b16 %v201
    %v241 = vunpack.c.l.b16 %v202
    %v242 = vunpack.c.l.b16 %v203
    %v243 = vunpack.c.l.b16 %v204
    %v244 = vunpack.c.l.b16 %v205
    %v245 = vunpack.c.l.b16 %v206
    %v246 = vunpack.c.l.b16 %v207
    %v247 = vunpack.c.l.b16 %v208
    %v248 = vunpack.c.l.b16 %v209
    %v249 = vunpack.c.l.b16 %v210
    %v250 = vunpack.c.l.b16 %v211
    %v251 = vpack.c.b16 %v236, %v235
    %v252 = vpack.c.b16 %v238, %v237
    %v253 = vpack.c.b16 %v240, %v239
    %v254 = vpack.c.b16 %v242, %v241
    %v255 = vpack.c.b16 %v244, %v243
    %v256 = vpack.c.b16 %v246, %v245
    %v257 = vpack.c.b16 %v248, %v247
    %v258 = vpack.c.b16 %v250, %v249
    %267 = vmatprep.subr.bf16.mxu0 0
    %268 = vmatpush1.bf16.msra.mxu0 %v258
    %269 = vmatprep.subr.bf16.mxu0 0
    %270 = vmatpush1.bf16.msra.mxu0 %v257
    %271 = vmatprep.subr.bf16.mxu0 0
    %272 = vmatpush1.bf16.msra.mxu0 %v256
    %273 = vmatprep.subr.bf16.mxu0 0
    %274 = vmatpush1.bf16.msra.mxu0 %v255
    %275 = vmatprep.subr.bf16.mxu0 0
    %276 = vmatpush1.bf16.msra.mxu0 %v254
    %277 = vmatprep.subr.bf16.mxu0 0
    %278 = vmatpush1.bf16.msra.mxu0 %v253
    %279 = vmatprep.subr.bf16.mxu0 0
    %280 = vmatpush1.bf16.msra.mxu0 %v252
    %281 = vmatprep.subr.bf16.mxu0 0
    %282 = vmatpush1.bf16.msra.mxu0 %v251
    %283 = vmatprep.subr.bf16.mxu0 0
    %284 = vmatpush2.bf16.msra.mxu0 0
    %285 = vmatprep.subr.bf16.mxu0 0
    %286 = vmatpush2.bf16.msra.mxu0 0
    %287 = vmatprep.subr.bf16.mxu0 0
    %288 = vmatpush2.bf16.msra.mxu0 0
    %289 = vmatprep.subr.bf16.mxu0 0
    %290 = vmatpush2.bf16.msra.mxu0 0
    %291 = vmatprep.subr.bf16.mxu0 0
    %292 = vmatpush2.bf16.msra.mxu0 0
    %293 = vmatprep.subr.bf16.mxu0 0
    %294 = vmatpush2.bf16.msra.mxu0 0
    %295 = vmatprep.subr.bf16.mxu0 0
    %296 = vmatpush2.bf16.msra.mxu0 0
    %297 = vmatprep.subr.bf16.mxu0 0
    %298 = vmatpush2.bf16.msra.mxu0 0
    %299 = vmatprep.mubr.bf16.mxu0 0
    %300 = vmatmul.mubr.bf16.gmra.mxu0 %v195
    %v301 = vpop.f32.mrf.mxu0
    %v302 = vadd.f32 %v217, %v301
    %v303 = vpop.f32.mrf.mxu0
    %v304 = vpop.f32.mrf.mxu0
    %v305 = vpop.f32.mrf.mxu0
    %306 = vdwg.mxu0
    %v307 = vmax.f32 %v302, 0.0
    %v308 = vpack.c.bf16 %v307, %v307
    %s309 = scalar_lea.vmem [#allocation7], 64
    %v310 = vld [vmem:[%s309] sm:$0xf]
    %v311 = vld [vmem:[%s309 + $0x4] sm:$0xf]
    %v312 = vld [vmem:[%s309 + $0x8] sm:$0xf]
    %v313 = vld [vmem:[%s309 + $0xc] sm:$0xf]
    %v314 = vld [vmem:[%s309 + $0x10] sm:$0xf]
    %v315 = vld [vmem:[%s309 + $0x14] sm:$0xf]
    %v316 = vld [vmem:[%s309 + $0x18] sm:$0xf]
    %v317 = vld [vmem:[%s309 + $0x1c] sm:$0xf]
    %v318 = vld [vmem:[%s309 + $0x20] sm:$0xf]
    %v319 = vld [vmem:[%s309 + $0x24] sm:$0xf]
    %v320 = vld [vmem:[%s309 + $0x28] sm:$0xf]
    %v321 = vld [vmem:[%s309 + $0x2c] sm:$0xf]
    %v322 = vld [vmem:[%s309 + $0x30] sm:$0xf]
    %v323 = vld [vmem:[%s309 + $0x34] sm:$0xf]
    %v324 = vld [vmem:[%s309 + $0x38] sm:$0xf]
    %v325 = vld [vmem:[%s309 + $0x3c] sm:$0xf]
    %s326 = scalar_lea.vmem %s4, 1
    %v327 = vld [vmem:[%s326] sm:$0x1]
    %v329 = vlaneseq
    %v330 = vshrl.u32 %v329, 7
    %v331 = vsub.s32 0, %v330
    %v332 = vrot.slane %v327, %v331
    %v350 = vunpack.c.l.b16 %v310
    %v351 = vunpack.c.l.b16 %v311
    %v352 = vunpack.c.l.b16 %v312
    %v353 = vunpack.c.l.b16 %v313
    %v354 = vunpack.c.l.b16 %v314
    %v355 = vunpack.c.l.b16 %v315
    %v356 = vunpack.c.l.b16 %v316
    %v357 = vunpack.c.l.b16 %v317
    %v358 = vunpack.c.l.b16 %v318
    %v359 = vunpack.c.l.b16 %v319
    %v360 = vunpack.c.l.b16 %v320
    %v361 = vunpack.c.l.b16 %v321
    %v362 = vunpack.c.l.b16 %v322
    %v363 = vunpack.c.l.b16 %v323
    %v364 = vunpack.c.l.b16 %v324
    %v365 = vunpack.c.l.b16 %v325
    %v366 = vpack.c.b16 %v351, %v350
    %v367 = vpack.c.b16 %v353, %v352
    %v368 = vpack.c.b16 %v355, %v354
    %v369 = vpack.c.b16 %v357, %v356
    %v370 = vpack.c.b16 %v359, %v358
    %v371 = vpack.c.b16 %v361, %v360
    %v372 = vpack.c.b16 %v363, %v362
    %v373 = vpack.c.b16 %v365, %v364
    %382 = vmatprep.subr.bf16.mxu0 0
    %383 = vmatpush1.bf16.msra.mxu0 %v373
    %384 = vmatprep.subr.bf16.mxu0 0
    %385 = vmatpush1.bf16.msra.mxu0 %v372
    %386 = vmatprep.subr.bf16.mxu0 0
    %387 = vmatpush1.bf16.msra.mxu0 %v371
    %388 = vmatprep.subr.bf16.mxu0 0
    %389 = vmatpush1.bf16.msra.mxu0 %v370
    %390 = vmatprep.subr.bf16.mxu0 0
    %391 = vmatpush1.bf16.msra.mxu0 %v369
    %392 = vmatprep.subr.bf16.mxu0 0
    %393 = vmatpush1.bf16.msra.mxu0 %v368
    %394 = vmatprep.subr.bf16.mxu0 0
    %395 = vmatpush1.bf16.msra.mxu0 %v367
    %396 = vmatprep.subr.bf16.mxu0 0
    %397 = vmatpush1.bf16.msra.mxu0 %v366
    %398 = vmatprep.subr.bf16.mxu0 0
    %399 = vmatpush2.bf16.msra.mxu0 0
    %400 = vmatprep.subr.bf16.mxu0 0
    %401 = vmatpush2.bf16.msra.mxu0 0
    %402 = vmatprep.subr.bf16.mxu0 0
    %403 = vmatpush2.bf16.msra.mxu0 0
    %404 = vmatprep.subr.bf16.mxu0 0
    %405 = vmatpush2.bf16.msra.mxu0 0
    %406 = vmatprep.subr.bf16.mxu0 0
    %407 = vmatpush2.bf16.msra.mxu0 0
    %408 = vmatprep.subr.bf16.mxu0 0
    %409 = vmatpush2.bf16.msra.mxu0 0
    %410 = vmatprep.subr.bf16.mxu0 0
    %411 = vmatpush2.bf16.msra.mxu0 0
    %412 = vmatprep.subr.bf16.mxu0 0
    %413 = vmatpush2.bf16.msra.mxu0 0
    %414 = vmatprep.mubr.bf16.mxu0 0
    %415 = vmatmul.mubr.bf16.gmra.mxu0 %v308
    %v416 = vpop.f32.mrf.mxu0
    %v417 = vadd.f32 %v332, %v416
    %v418 = vpop.f32.mrf.mxu0
    %v419 = vpop.f32.mrf.mxu0
    %v420 = vpop.f32.mrf.mxu0
    %421 = vdwg.mxu0
    %v422 = vmax.f32 %v417, 0.0
    %v423 = vpack.c.bf16 %v422, %v422
    %v424 = vld [vmem:[#allocation8] sm:$0xf]
    %v425 = vld [vmem:[#allocation8 + $0x4] sm:$0xf]
    %v426 = vld [vmem:[#allocation8 + $0x8] sm:$0xf]
    %v427 = vld [vmem:[#allocation8 + $0xc] sm:$0xf]
    %v428 = vld [vmem:[#allocation8 + $0x10] sm:$0xf]
    %v429 = vld [vmem:[#allocation8 + $0x14] sm:$0xf]
    %v430 = vld [vmem:[#allocation8 + $0x18] sm:$0xf]
    %v431 = vld [vmem:[#allocation8 + $0x1c] sm:$0xf]
    %v432 = vld [vmem:[#allocation8 + $0x20] sm:$0xf]
    %v433 = vld [vmem:[#allocation8 + $0x24] sm:$0xf]
    %v434 = vld [vmem:[#allocation8 + $0x28] sm:$0xf]
    %v435 = vld [vmem:[#allocation8 + $0x2c] sm:$0xf]
    %v436 = vld [vmem:[#allocation8 + $0x30] sm:$0xf]
    %v437 = vld [vmem:[#allocation8 + $0x34] sm:$0xf]
    %v438 = vld [vmem:[#allocation8 + $0x38] sm:$0xf]
    %v439 = vld [vmem:[#allocation8 + $0x3c] sm:$0xf]
    %v440 = vld [vmem:[%s6] sm:$0x1]
    %v442 = vlaneseq
    %v443 = vshrl.u32 %v442, 7
    %v444 = vsub.s32 0, %v443
    %v445 = vrot.slane %v440, %v444
    %v463 = vunpack.c.l.b16 %v424
    %v464 = vunpack.c.l.b16 %v425
    %v465 = vunpack.c.l.b16 %v426
    %v466 = vunpack.c.l.b16 %v427
    %v467 = vunpack.c.l.b16 %v428
    %v468 = vunpack.c.l.b16 %v429
    %v469 = vunpack.c.l.b16 %v430
    %v470 = vunpack.c.l.b16 %v431
    %v471 = vunpack.c.l.b16 %v432
    %v472 = vunpack.c.l.b16 %v433
    %v473 = vunpack.c.l.b16 %v434
    %v474 = vunpack.c.l.b16 %v435
    %v475 = vunpack.c.l.b16 %v436
    %v476 = vunpack.c.l.b16 %v437
    %v477 = vunpack.c.l.b16 %v438
    %v478 = vunpack.c.l.b16 %v439
    %v479 = vpack.c.b16 %v464, %v463
    %v480 = vpack.c.b16 %v466, %v465
    %v481 = vpack.c.b16 %v468, %v467
    %v482 = vpack.c.b16 %v470, %v469
    %v483 = vpack.c.b16 %v472, %v471
    %v484 = vpack.c.b16 %v474, %v473
    %v485 = vpack.c.b16 %v476, %v475
    %v486 = vpack.c.b16 %v478, %v477
    %495 = vmatprep.subr.bf16.mxu0 0
    %496 = vmatpush1.bf16.msra.mxu0 %v486
    %497 = vmatprep.subr.bf16.mxu0 0
    %498 = vmatpush1.bf16.msra.mxu0 %v485
    %499 = vmatprep.subr.bf16.mxu0 0
    %500 = vmatpush1.bf16.msra.mxu0 %v484
    %501 = vmatprep.subr.bf16.mxu0 0
    %502 = vmatpush1.bf16.msra.mxu0 %v483
    %503 = vmatprep.subr.bf16.mxu0 0
    %504 = vmatpush1.bf16.msra.mxu0 %v482
    %505 = vmatprep.subr.bf16.mxu0 0
    %506 = vmatpush1.bf16.msra.mxu0 %v481
    %507 = vmatprep.subr.bf16.mxu0 0
    %508 = vmatpush1.bf16.msra.mxu0 %v480
    %509 = vmatprep.subr.bf16.mxu0 0
    %510 = vmatpush1.bf16.msra.mxu0 %v479
    %511 = vmatprep.subr.bf16.mxu0 0
    %512 = vmatpush2.bf16.msra.mxu0 0
    %513 = vmatprep.subr.bf16.mxu0 0
    %514 = vmatpush2.bf16.msra.mxu0 0
    %515 = vmatprep.subr.bf16.mxu0 0
    %516 = vmatpush2.bf16.msra.mxu0 0
    %517 = vmatprep.subr.bf16.mxu0 0
    %518 = vmatpush2.bf16.msra.mxu0 0
    %519 = vmatprep.subr.bf16.mxu0 0
    %520 = vmatpush2.bf16.msra.mxu0 0
    %521 = vmatprep.subr.bf16.mxu0 0
    %522 = vmatpush2.bf16.msra.mxu0 0
    %523 = vmatprep.subr.bf16.mxu0 0
    %524 = vmatpush2.bf16.msra.mxu0 0
    %525 = vmatprep.subr.bf16.mxu0 0
    %526 = vmatpush2.bf16.msra.mxu0 0
    %527 = vmatprep.mubr.bf16.mxu0 0
    %528 = vmatmul.mubr.bf16.gmra.mxu0 %v423
    %v529 = vpop.f32.mrf.mxu0
    %v530 = vadd.f32 %v445, %v529
    %v531 = vpop.f32.mrf.mxu0
    %v532 = vpop.f32.mrf.mxu0
    %v533 = vpop.f32.mrf.mxu0
    %534 = vdwg.mxu0
    %535 = vst [vmem:[#allocation10] sm:$0xff] %v530
    // Predicated region
    $region46: #{tpu_custom_call.1} parent=1 // pred_check
      _
    $region47: #{tpu_custom_call.1} parent=1 // pred_check_branch
      %537 = sbr.rel (0) target = $region49
    $region48: #{tpu_custom_call.1} parent=1 // pred_region
      %s539 = ssub.s32 128, 128
      %540 = vsyncadd [#allocation4], %s539
      %s542 = sshll.u32 [#allocation10], 4
      %s543 = int_to_ptr.vmem [resolvable:$true] %s542
      %545 = dma.vmem_to_hbm [thread:$0]  %s543, 128, %s7, [#allocation4]
    $region49: #{tpu_custom_call.1} parent=1 // pred_fallthru
      _
    // Predicated region
    $region50: #{tpu_custom_call.1} parent=1 // pred_check
      _
    $region51: #{tpu_custom_call.1} parent=1 // pred_check_branch
      %547 = sbr.rel (0) target = $region53
    $region52: #{tpu_custom_call.1} parent=1 // pred_region
      %548 = dma.done [#allocation4], 128
    $region53: #{tpu_custom_call.1} parent=1 // pred_fallthru
      _
    %549 = vsyncpa [#allocation3], 1
    %550 = vsyncpa [#allocation6], 1
    %551 = vsyncpa [#allocation9], 1
    %552 = vsyncpa [#allocation4], 1

</llo_original>
